<compile_context>
chip_gen: v5e
topology: v5e:2x2
jax: 0.10.0
libtpu: 0.0.40
codegen_flags: <defaults>
</compile_context>

<pallas_src>
import functools
import math

import jax
import jax.numpy as jnp
from jax.experimental import pallas as pl
from jax.experimental.pallas import tpu as pltpu


def _round_up(v, m):
    return ((v + m - 1) // m) * m


def _mlp_fused_kernel(*refs, num_layers, keep_last_layer, negative_slope):
    """Whole MLP for one row tile.

    refs = (x_ref, w0_ref, b0_ref, ..., w{L-1}_ref, b{L-1}_ref, o_ref).
    Feature dims are pre-padded to multiples of 128; padded columns have zero
    weights/bias so they stay exactly zero through every layer and are sliced
    off in the wrapper.
    """
    x_ref = refs[0]
    o_ref = refs[1 + 2 * num_layers]

    h = x_ref[...]
    for l in range(num_layers):
        w = refs[1 + 2 * l][...]            # (d_in_p, d_out_p), compute dtype
        b = refs[2 + 2 * l][...]            # (1, d_out_p) f32, broadcasts over rows
        y = jnp.dot(h.astype(w.dtype), w, preferred_element_type=jnp.float32)
        y = y + b                           # bias added once per output tile
        if (l < num_layers - 1) or (not keep_last_layer):
            y = jnp.where(y > 0.0, y, negative_slope * y)   # LeakyReLU in f32
        # TODO(synk): nn.Dropout(p=0.3) is treated as eval-mode identity here;
        # training-mode parity would need pltpu.prng_seed/prng_random_bits
        # masking and 1/(1-p) scaling on the hidden activations.
        h = y
    o_ref[...] = h.astype(o_ref.dtype)


def mlp_forward(x, params, *, keep_last_layer=False, negative_slope=0.01,
                compute_dtype=jnp.float32, tm_max=256):
    """Fused MLP forward.

    x: (N, in_dim) f32.
    params: list of (W (fan_in, fan_out), b (fan_out,)) — W is the transpose of
            PyTorch nn.Linear's (out, in) layout so the kernel computes x @ W + b.
    """
    n, in_dim = x.shape
    num_layers = len(params)
    out_dim = params[-1][0].shape[1]

    # Lane-dense padding: every feature dim -> multiple of 128 lanes.
    dims = [in_dim] + [w.shape[1] for (w, _) in params]
    dims_p = [_round_up(d, 128) for d in dims]

    # Row tile: multiple of 8 sublanes (or full extent), capped at 256 so the
    # double-buffered x/out tiles + resident weights stay far under the 32 MiB
    # scoped-VMEM default (and v7x's 64 MiB physical VMEM).
    tm = min(tm_max, _round_up(n, 8))
    n_p = _round_up(n, tm)

    x_p = jnp.zeros((n_p, dims_p[0]), compute_dtype)
    x_p = x_p.at[:n, :in_dim].set(x.astype(compute_dtype))

    flat_inputs = []
    in_specs = [pl.BlockSpec((tm, dims_p[0]), lambda i: (i, 0))]
    for l, (w, b) in enumerate(params):
        wp = jnp.zeros((dims_p[l], dims_p[l + 1]), compute_dtype)
        wp = wp.at[: w.shape[0], : w.shape[1]].set(w.astype(compute_dtype))
        bp = jnp.zeros((1, dims_p[l + 1]), jnp.float32)
        bp = bp.at[0, : b.shape[0]].set(b.astype(jnp.float32))
        flat_inputs += [wp, bp]
        # Constant block index -> weights/biases stay VMEM-resident across tiles.
        in_specs.append(pl.BlockSpec((dims_p[l], dims_p[l + 1]), lambda i: (0, 0)))
        in_specs.append(pl.BlockSpec((1, dims_p[l + 1]), lambda i: (0, 0)))
    out_spec = pl.BlockSpec((tm, dims_p[-1]), lambda i: (i, 0))

    itemsize = jnp.dtype(compute_dtype).itemsize
    flops = sum(2 * n_p * dims_p[l] * dims_p[l + 1] for l in range(num_layers))
    bytes_accessed = (
        n_p * dims_p[0] * itemsize
        + sum(int(a.size) * a.dtype.itemsize for a in flat_inputs)
        + n_p * dims_p[-1] * 4
    )

    kernel = functools.partial(
        _mlp_fused_kernel,
        num_layers=num_layers,
        keep_last_layer=keep_last_layer,
        negative_slope=negative_slope,
    )

    out_p = pl.pallas_call(
        kernel,
        out_shape=jax.ShapeDtypeStruct((n_p, dims_p[-1]), jnp.float32),
        grid_spec=pltpu.PrefetchScalarGridSpec(
            num_scalar_prefetch=0,
            grid=(n_p // tm,),
            in_specs=in_specs,
            out_specs=out_spec,
        ),
        compiler_params=pltpu.CompilerParams(
            # Row tiles are independent -> shard across TensorCores on v7x.
            dimension_semantics=("parallel",),
        ),
        cost_estimate=pl.CostEstimate(
            flops=flops, transcendentals=0, bytes_accessed=bytes_accessed),
    )(x_p, *flat_inputs)

    return out_p[:n, :out_dim]


def init_mlp_params(key, in_dim, out_dim, hid_dim, layers=2):
    """Deterministic PyTorch-style (Kaiming-uniform) init of the Linear stack."""
    if layers == 1:
        dims = [(in_dim, out_dim)]
    else:
        dims = [(in_dim, hid_dim)]
        dims += [(hid_dim, hid_dim)] * (layers - 2)
        dims += [(hid_dim, out_dim)]
    params = []
    for (fan_in, fan_out) in dims:
        key, kw, kb = jax.random.split(key, 3)
        bound = 1.0 / math.sqrt(fan_in)
        w = jax.random.uniform(kw, (fan_in, fan_out), jnp.float32, -bound, bound)
        b = jax.random.uniform(kb, (fan_out,), jnp.float32, -bound, bound)
        params.append((w, b))
    return params


def mlp_ref(x, params, *, keep_last_layer=False, negative_slope=0.01):
    """Plain-JAX reference (eval mode: dropout = identity)."""
    def act(v):
        return jnp.where(v > 0, v, negative_slope * v)
    for (w, b) in params[:-1]:
        x = act(x @ w + b)
    w, b = params[-1]
    x = x @ w + b
    if not keep_last_layer:
        x = act(x)
    return x


if __name__ == "__main__":
    key = jax.random.PRNGKey(0)
    k_x, k_p, k_x2, k_p2 = jax.random.split(key, 4)

    # Small shapes matching the module defaults (layers=2, LeakyReLU, keep_last=False).
    batch, in_dim, hid_dim, out_dim = 8, 16, 32, 8
    x = jax.random.normal(k_x, (batch, in_dim), jnp.float32)
    params = init_mlp_params(k_p, in_dim, out_dim, hid_dim, layers=2)

    y = jax.block_until_ready(mlp_forward(x, params, keep_last_layer=False))
    y_ref = mlp_ref(x, params, keep_last_layer=False)
    assert y.shape == (batch, out_dim)
    assert jnp.allclose(y, y_ref, atol=1e-5, rtol=1e-5), "f32 mismatch vs reference"

    # Larger, non-aligned shapes: exercises multi-step row tiling + feature padding.
    n2, in2, hid2, out2 = 600, 200, 256, 10
    x2 = jax.random.normal(k_x2, (n2, in2), jnp.float32)
    params2 = init_mlp_params(k_p2, in2, out2, hid2, layers=3)
    y2 = jax.block_until_ready(mlp_forward(x2, params2, keep_last_layer=False))
    y2_ref = mlp_ref(x2, params2, keep_last_layer=False)
    assert y2.shape == (n2, out2)
    assert jnp.allclose(y2, y2_ref, atol=1e-4, rtol=1e-4), "tiled f32 mismatch"

    # bf16 inputs/weights with f32 accumulation (MXU-friendly path); looser tol.
    y_bf16 = jax.block_until_ready(
        mlp_forward(x, params, keep_last_layer=False, compute_dtype=jnp.bfloat16))
    assert jnp.allclose(y_bf16, y_ref, atol=5e-2, rtol=5e-2), "bf16 mismatch"

    print("KERNEL_OK")
</pallas_src>

<mosaic_0001>
module attributes {stable_mosaic.version = 11 : i64} {
  func.func @_mlp_fused_kernel(%arg0: i32, %arg1: memref<8x128xf32, #tpu.memory_space<vmem>>, %arg2: memref<128x128xf32, #tpu.memory_space<vmem>>, %arg3: memref<1x128xf32, #tpu.memory_space<vmem>>, %arg4: memref<128x128xf32, #tpu.memory_space<vmem>>, %arg5: memref<1x128xf32, #tpu.memory_space<vmem>>, %arg6: memref<8x128xf32, #tpu.memory_space<vmem>>) attributes {dimension_semantics = [#tpu.dimension_semantics<parallel>], iteration_bounds = array<i64: 1>, scalar_prefetch = 0 : i64, scratch_operands = 0 : i64, tpu.core_type = #tpu.core_type<tc>, window_params = [{transform_indices = @transform_0, window_bounds = array<i64: 8, 128>}, {pipeline_mode = #tpu.pipeline_mode<synchronous>, transform_indices = @transform_1, window_bounds = array<i64: 128, 128>}, {pipeline_mode = #tpu.pipeline_mode<synchronous>, transform_indices = @transform_2, window_bounds = array<i64: 1, 128>}, {pipeline_mode = #tpu.pipeline_mode<synchronous>, transform_indices = @transform_3, window_bounds = array<i64: 128, 128>}, {pipeline_mode = #tpu.pipeline_mode<synchronous>, transform_indices = @transform_4, window_bounds = array<i64: 1, 128>}, {transform_indices = @transform_5, window_bounds = array<i64: 8, 128>}]} {
    %c0 = arith.constant 0 : index
    %c0_0 = arith.constant 0 : index
    %0 = vector.load %arg1[%c0, %c0_0] : memref<8x128xf32, #tpu.memory_space<vmem>>, vector<8x128xf32>
    %c0_1 = arith.constant 0 : index
    %c0_2 = arith.constant 0 : index
    %1 = vector.load %arg2[%c0_1, %c0_2] : memref<128x128xf32, #tpu.memory_space<vmem>>, vector<128x128xf32>
    %c0_3 = arith.constant 0 : index
    %c0_4 = arith.constant 0 : index
    %2 = vector.load %arg3[%c0_3, %c0_4] : memref<1x128xf32, #tpu.memory_space<vmem>>, vector<1x128xf32>
    %cst = arith.constant dense<0.000000e+00> : vector<8x128xf32>
    %3 = tpu.matmul %0, %1, %cst {dimension_numbers = #tpu.dot_dimension_numbers<[1], [0], [0], [1], [0, 0, 1, 1], [], []>} : vector<8x128xf32>, vector<128x128xf32>, vector<8x128xf32> -> vector<8x128xf32>
    %4 = vector.broadcast %2 : vector<1x128xf32> to vector<8x128xf32>
    %5 = arith.addf %3, %4 : vector<8x128xf32>
    %cst_5 = arith.constant 0.000000e+00 : f32
    %6 = vector.broadcast %cst_5 : f32 to vector<8x128xf32>
    %7 = arith.cmpf ogt, %5, %6 : vector<8x128xf32>
    %cst_6 = arith.constant 0.00999999977 : f32
    %8 = vector.broadcast %cst_6 : f32 to vector<8x128xf32>
    %9 = arith.mulf %8, %5 : vector<8x128xf32>
    %10 = arith.select %7, %5, %9 : vector<8x128xi1>, vector<8x128xf32>
    %c0_7 = arith.constant 0 : index
    %c0_8 = arith.constant 0 : index
    %11 = vector.load %arg4[%c0_7, %c0_8] : memref<128x128xf32, #tpu.memory_space<vmem>>, vector<128x128xf32>
    %c0_9 = arith.constant 0 : index
    %c0_10 = arith.constant 0 : index
    %12 = vector.load %arg5[%c0_9, %c0_10] : memref<1x128xf32, #tpu.memory_space<vmem>>, vector<1x128xf32>
    %cst_11 = arith.constant dense<0.000000e+00> : vector<8x128xf32>
    %13 = tpu.matmul %10, %11, %cst_11 {dimension_numbers = #tpu.dot_dimension_numbers<[1], [0], [0], [1], [0, 0, 1, 1], [], []>} : vector<8x128xf32>, vector<128x128xf32>, vector<8x128xf32> -> vector<8x128xf32>
    %14 = vector.broadcast %12 : vector<1x128xf32> to vector<8x128xf32>
    %15 = arith.addf %13, %14 : vector<8x128xf32>
    %cst_12 = arith.constant 0.000000e+00 : f32
    %16 = vector.broadcast %cst_12 : f32 to vector<8x128xf32>
    %17 = arith.cmpf ogt, %15, %16 : vector<8x128xf32>
    %cst_13 = arith.constant 0.00999999977 : f32
    %18 = vector.broadcast %cst_13 : f32 to vector<8x128xf32>
    %19 = arith.mulf %18, %15 : vector<8x128xf32>
    %20 = arith.select %17, %15, %19 : vector<8x128xi1>, vector<8x128xf32>
    %c0_14 = arith.constant 0 : index
    %c0_15 = arith.constant 0 : index
    %21 = vector.load %arg6[%c0_14, %c0_15] : memref<8x128xf32, #tpu.memory_space<vmem>>, vector<8x128xf32>
    tpu.vector_store %arg6[%c0_14, %c0_15], %20 {strides = array<i32>} : memref<8x128xf32, #tpu.memory_space<vmem>>, vector<8x128xf32>,
    return
  }
  func.func @transform_0(%arg0: i32) -> (i32, i32) {
    %c0_i32 = arith.constant 0 : i32
    %c0_i32_0 = arith.constant 0 : i32
    return %arg0, %c0_i32 : i32, i32
  }
  func.func @transform_1(%arg0: i32) -> (i32, i32) {
    %c0_i32 = arith.constant 0 : i32
    %c0_i32_0 = arith.constant 0 : i32
    %c0_i32_1 = arith.constant 0 : i32
    return %c0_i32, %c0_i32_0 : i32, i32
  }
  func.func @transform_2(%arg0: i32) -> (i32, i32) {
    %c0_i32 = arith.constant 0 : i32
    %c0_i32_0 = arith.constant 0 : i32
    %c0_i32_1 = arith.constant 0 : i32
    return %c0_i32, %c0_i32_0 : i32, i32
  }
  func.func @transform_3(%arg0: i32) -> (i32, i32) {
    %c0_i32 = arith.constant 0 : i32
    %c0_i32_0 = arith.constant 0 : i32
    %c0_i32_1 = arith.constant 0 : i32
    return %c0_i32, %c0_i32_0 : i32, i32
  }
  func.func @transform_4(%arg0: i32) -> (i32, i32) {
    %c0_i32 = arith.constant 0 : i32
    %c0_i32_0 = arith.constant 0 : i32
    %c0_i32_1 = arith.constant 0 : i32
    return %c0_i32, %c0_i32_0 : i32, i32
  }
  func.func @transform_5(%arg0: i32) -> (i32, i32) {
    %c0_i32 = arith.constant 0 : i32
    %c0_i32_0 = arith.constant 0 : i32
    return %arg0, %c0_i32 : i32, i32
  }
}

</mosaic_0001>

<llo_original>
// kernel: tpu_custom_call.1
$region0: #{tpu_custom_call.1}
  #allocation0 [shape = 'u32[]', space=smem, size = 0x4, offset = 0x4, fixed_abs, tag = 'smem constant byte address 0x4 - core index']
  #allocation1 [shape = 'u32[72,128]{1,0:T(1,128)}', space=vmem, size = 0x9000, scoped, tag = 'internal scratch']
  %s0 = inlined_call_operand.hbm [shape: f32[8,128], index: 0, kind: input, shape index: {}]
  %s1 = inlined_call_operand.hbm [shape: f32[128,128], index: 1, kind: input, shape index: {}]
  %s2 = inlined_call_operand.vmem [shape: f32[1,128], index: 2, kind: input, shape index: {}]
  %s3 = inlined_call_operand.hbm [shape: f32[128,128], index: 3, kind: input, shape index: {}]
  %s4 = inlined_call_operand.vmem [shape: f32[1,128], index: 4, kind: input, shape index: {}]
  %s5 = inlined_call_operand.hbm [shape: f32[8,128], index: 5, kind: output, shape index: {}]
  %s6 = sld [smem:[#allocation0]]
  $region42: #{tpu_custom_call.1} parent=0
    _
  %s8 = ssub.s32 1, %s6
  %s9 = scalar_select 0, %s8, %s6
  $region1: #{tpu_custom_call.1} parent=0
    #allocation2 [shape = 'u8[4096]{0}', space=vmem, size = 0x1000, scoped, tag = 'input window, operand 0, single buffered']
    #allocation3 [shape = 's32[1]{0}', space=sflag, size = 0x4, scoped, tag = 'scoped memory for tpu_custom_call.1']
    #allocation4 [shape = 's32[1]{0}', space=sflag, size = 0x4, scoped, tag = 'scoped memory for tpu_custom_call.1']
    #allocation5 [shape = 'u8[65536]{0}', space=vmem, size = 0x10000, scoped, tag = 'input window, operand 1, single buffered']
    #allocation6 [shape = 's32[1]{0}', space=sflag, size = 0x4, scoped, tag = 'scoped memory for tpu_custom_call.1']
    #allocation7 [shape = 'u8[65536]{0}', space=vmem, size = 0x10000, scoped, tag = 'input window, operand 3, single buffered']
    #allocation8 [shape = 'u8[4096]{0}', space=vmem, size = 0x1000, scoped, tag = 'output window, operand 0, single buffered']
    %10 = vsyncpa [#allocation3], 0
    %11 = vsyncpa [#allocation6], 0
    %12 = vsyncpa [#allocation4], 0
    // Predicated region
    $region2: #{tpu_custom_call.1} parent=1 // pred_check
      _
    $region3: #{tpu_custom_call.1} parent=1 // pred_check_branch
      %14 = sbr.rel (0) target = $region5
    $region4: #{tpu_custom_call.1} parent=1 // pred_region
      %16 = vsyncadd [#allocation3], 0
      %s18 = sshll.u32 %s0, 4
      %s19 = int_to_ptr.hbm [resolvable:$true] %s18
      %s20 = sshll.u32 [#allocation2], 4
      %s21 = int_to_ptr.vmem [resolvable:$true] %s20
      %23 = dma.hbm_to_vmem [thread:$0]  %s19, 128, %s21, [#allocation3]
    $region5: #{tpu_custom_call.1} parent=1 // pred_fallthru
      _
    // Predicated region
    $region6: #{tpu_custom_call.1} parent=1 // pred_check
      _
    $region7: #{tpu_custom_call.1} parent=1 // pred_check_branch
      %25 = sbr.rel (0) target = $region9
    $region8: #{tpu_custom_call.1} parent=1 // pred_region
      %27 = vsyncadd [#allocation6], 0
      %s28 = sshll.u32 %s1, 4
      %s29 = int_to_ptr.hbm [resolvable:$true] %s28
      %s30 = sshll.u32 [#allocation5], 4
      %s31 = int_to_ptr.vmem [resolvable:$true] %s30
      %36 = dma.hbm_to_vmem [thread:$0]  %s29, 2048, %s31, [#allocation6], 128, 128, 8
    $region9: #{tpu_custom_call.1} parent=1 // pred_fallthru
      _
    // Predicated region
    $region10: #{tpu_custom_call.1} parent=1 // pred_check
      _
    $region11: #{tpu_custom_call.1} parent=1 // pred_check_branch
      %38 = sbr.rel (0) target = $region13
    $region12: #{tpu_custom_call.1} parent=1 // pred_region
      _
    $region13: #{tpu_custom_call.1} parent=1 // pred_fallthru
      _
    // Predicated region
    $region14: #{tpu_custom_call.1} parent=1 // pred_check
      _
    $region15: #{tpu_custom_call.1} parent=1 // pred_check_branch
      %40 = sbr.rel (0) target = $region17
    $region16: #{tpu_custom_call.1} parent=1 // pred_region
      %42 = vsyncadd [#allocation6], 0
      %s43 = sshll.u32 %s3, 4
      %s44 = int_to_ptr.hbm [resolvable:$true] %s43
      %s45 = sshll.u32 [#allocation7], 4
      %s46 = int_to_ptr.vmem [resolvable:$true] %s45
      %51 = dma.hbm_to_vmem [thread:$0]  %s44, 2048, %s46, [#allocation6], 128, 128, 8
    $region17: #{tpu_custom_call.1} parent=1 // pred_fallthru
      _
    // Predicated region
    $region18: #{tpu_custom_call.1} parent=1 // pred_check
      _
    $region19: #{tpu_custom_call.1} parent=1 // pred_check_branch
      %53 = sbr.rel (0) target = $region21
    $region20: #{tpu_custom_call.1} parent=1 // pred_region
      _
    $region21: #{tpu_custom_call.1} parent=1 // pred_fallthru
      _
    // Predicated region
    $region22: #{tpu_custom_call.1} parent=1 // pred_check
      _
    $region23: #{tpu_custom_call.1} parent=1 // pred_check_branch
      %55 = sbr.rel (0) target = $region25
    $region24: #{tpu_custom_call.1} parent=1 // pred_region
      %57 = dma.done [#allocation3], 128
    $region25: #{tpu_custom_call.1} parent=1 // pred_fallthru
      _
    // Predicated region
    $region26: #{tpu_custom_call.1} parent=1 // pred_check
      _
    $region27: #{tpu_custom_call.1} parent=1 // pred_check_branch
      %59 = sbr.rel (0) target = $region29
    $region28: #{tpu_custom_call.1} parent=1 // pred_region
      %61 = dma.done [#allocation6], 2048
    $region29: #{tpu_custom_call.1} parent=1 // pred_fallthru
      _
    // Predicated region
    $region30: #{tpu_custom_call.1} parent=1 // pred_check
      _
    $region31: #{tpu_custom_call.1} parent=1 // pred_check_branch
      %63 = sbr.rel (0) target = $region33
    $region32: #{tpu_custom_call.1} parent=1 // pred_region
      %65 = dma.done [#allocation6], 2048
    $region33: #{tpu_custom_call.1} parent=1 // pred_fallthru
      _
    %v66 = vld [vmem:[#allocation2] sm:$0xff]
    %v67 = vld [vmem:[#allocation5] sm:$0xff]
    %v68 = vld [vmem:[#allocation5 + $0x8] sm:$0xff]
    %v69 = vld [vmem:[#allocation5 + $0x10] sm:$0xff]
    %v70 = vld [vmem:[#allocation5 + $0x18] sm:$0xff]
    %v71 = vld [vmem:[#allocation5 + $0x20] sm:$0xff]
    %v72 = vld [vmem:[#allocation5 + $0x28] sm:$0xff]
    %v73 = vld [vmem:[#allocation5 + $0x30] sm:$0xff]
    %v74 = vld [vmem:[#allocation5 + $0x38] sm:$0xff]
    %v75 = vld [vmem:[#allocation5 + $0x40] sm:$0xff]
    %v76 = vld [vmem:[#allocation5 + $0x48] sm:$0xff]
    %v77 = vld [vmem:[#allocation5 + $0x50] sm:$0xff]
    %v78 = vld [vmem:[#allocation5 + $0x58] sm:$0xff]
    %v79 = vld [vmem:[#allocation5 + $0x60] sm:$0xff]
    %v80 = vld [vmem:[#allocation5 + $0x68] sm:$0xff]
    %v81 = vld [vmem:[#allocation5 + $0x70] sm:$0xff]
    %v82 = vld [vmem:[#allocation5 + $0x78] sm:$0xff]
    %v83 = vld [vmem:[%s2] sm:$0x1]
    %v85 = vperm.slane %v83, 0
    %87 = vmatpush.msra.mxu0 %v82
    %88 = vmatpush.msra.mxu0 %v81
    %89 = vmatpush.msra.mxu0 %v80
    %90 = vmatpush.msra.mxu0 %v79
    %91 = vmatpush.msra.mxu0 %v78
    %92 = vmatpush.msra.mxu0 %v77
    %93 = vmatpush.msra.mxu0 %v76
    %94 = vmatpush.msra.mxu0 %v75
    %95 = vmatpush.msra.mxu0 %v74
    %96 = vmatpush.msra.mxu0 %v73
    %97 = vmatpush.msra.mxu0 %v72
    %98 = vmatpush.msra.mxu0 %v71
    %99 = vmatpush.msra.mxu0 %v70
    %100 = vmatpush.msra.mxu0 %v69
    %101 = vmatpush.msra.mxu0 %v68
    %102 = vmatpush.msra.mxu0 %v67
    %103 = vmatmul.f32.gmra.mxu0 %v66
    %v104 = vpop.f32.mrf.mxu0
    %v105 = vadd.f32 %v85, %v104
    %106 = vdwg.mxu0
    %vm107 = vcmp.gt.f32.partialorder %v105, 0.0
    %v108 = vmul.f32 %v105, 0.01
    %v109 = vsel %vm107, %v105, %v108
    %v110 = vld [vmem:[#allocation7] sm:$0xff]
    %v111 = vld [vmem:[#allocation7 + $0x8] sm:$0xff]
    %v112 = vld [vmem:[#allocation7 + $0x10] sm:$0xff]
    %v113 = vld [vmem:[#allocation7 + $0x18] sm:$0xff]
    %v114 = vld [vmem:[#allocation7 + $0x20] sm:$0xff]
    %v115 = vld [vmem:[#allocation7 + $0x28] sm:$0xff]
    %v116 = vld [vmem:[#allocation7 + $0x30] sm:$0xff]
    %v117 = vld [vmem:[#allocation7 + $0x38] sm:$0xff]
    %v118 = vld [vmem:[#allocation7 + $0x40] sm:$0xff]
    %v119 = vld [vmem:[#allocation7 + $0x48] sm:$0xff]
    %v120 = vld [vmem:[#allocation7 + $0x50] sm:$0xff]
    %v121 = vld [vmem:[#allocation7 + $0x58] sm:$0xff]
    %v122 = vld [vmem:[#allocation7 + $0x60] sm:$0xff]
    %v123 = vld [vmem:[#allocation7 + $0x68] sm:$0xff]
    %v124 = vld [vmem:[#allocation7 + $0x70] sm:$0xff]
    %v125 = vld [vmem:[#allocation7 + $0x78] sm:$0xff]
    %v126 = vld [vmem:[%s4] sm:$0x1]
    %v128 = vperm.slane %v126, 0
    %130 = vmatpush.msra.mxu0 %v125
    %131 = vmatpush.msra.mxu0 %v124
    %132 = vmatpush.msra.mxu0 %v123
    %133 = vmatpush.msra.mxu0 %v122
    %134 = vmatpush.msra.mxu0 %v121
    %135 = vmatpush.msra.mxu0 %v120
    %136 = vmatpush.msra.mxu0 %v119
    %137 = vmatpush.msra.mxu0 %v118
    %138 = vmatpush.msra.mxu0 %v117
    %139 = vmatpush.msra.mxu0 %v116
    %140 = vmatpush.msra.mxu0 %v115
    %141 = vmatpush.msra.mxu0 %v114
    %142 = vmatpush.msra.mxu0 %v113
    %143 = vmatpush.msra.mxu0 %v112
    %144 = vmatpush.msra.mxu0 %v111
    %145 = vmatpush.msra.mxu0 %v110
    %146 = vmatmul.f32.gmra.mxu0 %v109
    %v147 = vpop.f32.mrf.mxu0
    %v148 = vadd.f32 %v128, %v147
    %149 = vdwg.mxu0
    %vm150 = vcmp.gt.f32.partialorder %v148, 0.0
    %v151 = vmul.f32 %v148, 0.01
    %v152 = vsel %vm150, %v148, %v151
    %153 = vst [vmem:[#allocation8] sm:$0xff] %v152
    // Predicated region
    $region34: #{tpu_custom_call.1} parent=1 // pred_check
      _
    $region35: #{tpu_custom_call.1} parent=1 // pred_check_branch
      %155 = sbr.rel (0) target = $region37
    $region36: #{tpu_custom_call.1} parent=1 // pred_region
      %157 = vsyncadd [#allocation4], 0
      %s159 = sshll.u32 [#allocation8], 4
      %s160 = int_to_ptr.vmem [resolvable:$true] %s159
      %s161 = sshll.u32 %s5, 4
      %s162 = int_to_ptr.hbm [resolvable:$true] %s161
      %164 = dma.vmem_to_hbm [thread:$0]  %s160, 128, %s162, [#allocation4]
    $region37: #{tpu_custom_call.1} parent=1 // pred_fallthru
      _
    // Predicated region
    $region38: #{tpu_custom_call.1} parent=1 // pred_check
      _
    $region39: #{tpu_custom_call.1} parent=1 // pred_check_branch
      %166 = sbr.rel (0) target = $region41
    $region40: #{tpu_custom_call.1} parent=1 // pred_region
      %168 = dma.done [#allocation4], 128
    $region41: #{tpu_custom_call.1} parent=1 // pred_fallthru
      _
    %169 = vsyncpa [#allocation3], 1
    %170 = vsyncpa [#allocation6], 1
    %171 = vsyncpa [#allocation4], 1

</llo_original>
